<compile_context>
chip_gen: v7x
topology: tpu7x:2x2x1
jax: 0.10.0
libtpu: 0.0.40
codegen_flags: <defaults>
</compile_context>

<pallas_src>
import jax
import jax.numpy as jnp
from jax import lax
from jax.experimental import pallas as pl
from jax.experimental.pallas import tpu as pltpu


def _round_up(x: int, m: int) -> int:
    return ((x + m - 1) // m) * m


def _wordbag_kernel(idx_ref, emb_ref, out_ref):
    # idx_ref : VMEM (TB, L) int32   -- word ids for TB sentences (one tile)
    # emb_ref : VMEM (V, E)  float32 -- full embedding table (constant block)
    # out_ref : VMEM (TB, E)         -- bag sums for this sentence tile
    tb, L = idx_ref.shape
    V = emb_ref.shape[0]

    idx = idx_ref[...]                                        # (TB, L), one load
    vocab_iota = lax.broadcasted_iota(jnp.int32, (tb, V), 1)  # hoisted once

    # counts[b, v] = #{ l : idx[b, l] == v }.
    # Two accumulators break the add dependence chain so compares/adds co-issue.
    c0 = jnp.zeros((tb, V), jnp.float32)
    c1 = jnp.zeros((tb, V), jnp.float32)
    for l in range(0, L - 1, 2):                 # L is static and small
        c0 = c0 + (vocab_iota == idx[:, l:l + 1]).astype(jnp.float32)
        c1 = c1 + (vocab_iota == idx[:, l + 1:l + 2]).astype(jnp.float32)
    if L % 2:
        c0 = c0 + (vocab_iota == idx[:, L - 1:L]).astype(jnp.float32)
    counts = c0 + c1

    # Whole bag reduction as one MXU matmul: (TB, V) @ (V, E) -> (TB, E).
    acc = jnp.dot(
        counts,
        emb_ref[...],
        preferred_element_type=jnp.float32,
        precision=lax.Precision.HIGHEST,
    )
    out_ref[...] = acc.astype(out_ref.dtype)


def wordbag_forward(sentences, embedding_weight, words_per_sentence=None, *, tb=None):
    """Pallas TPU implementation of WordBag.forward (EmbeddingBag, mode='sum').

    sentences          : int (B, L) word indices
    embedding_weight   : float32 (V, E) embedding table
    words_per_sentence : unused (EmbeddingBag's 2-D path ignores it)
    returns            : (B, E) bag sums, dtype of `embedding_weight`
    """
    del words_per_sentence  # not used by nn.EmbeddingBag with 2-D input
    sentences = jnp.asarray(sentences, jnp.int32)
    B, L = sentences.shape
    V, E = embedding_weight.shape

    # Sentence-tile size: >= 8 sublanes, capped at 128 rows per MXU pass.
    if tb is None:
        tb = min(128, _round_up(max(B, 1), 8))
    tb = max(8, _round_up(int(tb), 8))
    b_pad = _round_up(B, tb)
    if b_pad != B:
        # Padded rows point at table row 0; their outputs are sliced off below.
        sentences = jnp.pad(sentences, ((0, b_pad - B), (0, 0)))

    grid = (b_pad // tb,)

    # VMEM budget: double-buffered table + idx/out tiles + counts, plus slack.
    table_bytes = V * E * 4
    tile_bytes = tb * (L + E + V) * 4
    vmem_limit = int(max(2 * table_bytes + 4 * tile_bytes + (1 << 20),
                         16 * 1024 * 1024))

    out = pl.pallas_call(
        _wordbag_kernel,
        out_shape=jax.ShapeDtypeStruct((b_pad, E), embedding_weight.dtype),
        grid_spec=pltpu.PrefetchScalarGridSpec(
            num_scalar_prefetch=0,
            grid=grid,
            in_specs=[
                pl.BlockSpec((tb, L), lambda t: (t, 0)),   # index tile (VMEM)
                pl.BlockSpec((V, E), lambda t: (0, 0)),    # table, constant block
            ],
            out_specs=pl.BlockSpec((tb, E), lambda t: (t, 0)),
        ),
        compiler_params=pltpu.CompilerParams(
            dimension_semantics=("parallel",),   # independent sentence tiles
            vmem_limit_bytes=vmem_limit,
        ),
    )(sentences, embedding_weight)

    return out[:B]


def _reference(sentences, embedding_weight):
    return jnp.take(embedding_weight, sentences, axis=0).sum(axis=1)


if __name__ == "__main__":
    vocab_size = 64      # V
    emb_size = 128       # E (lane axis)
    n_sentences = 4      # B
    word_pad_len = 8     # L

    key = jax.random.PRNGKey(0)
    k_emb, k_idx, k_len, k_idx2 = jax.random.split(key, 4)

    # Deterministic parameter init (nn.EmbeddingBag weight: (vocab_size, emb_size)).
    embedding_weight = jax.random.normal(k_emb, (vocab_size, emb_size), jnp.float32)

    # Deterministic example inputs.
    sentences = jax.random.randint(
        k_idx, (n_sentences, word_pad_len), 0, vocab_size, dtype=jnp.int32
    )
    words_per_sentence = jax.random.randint(
        k_len, (n_sentences,), 1, word_pad_len + 1, dtype=jnp.int32
    )  # accepted for API parity; ignored by the forward (as in PyTorch)

    out = wordbag_forward(sentences, embedding_weight, words_per_sentence)
    out = jax.block_until_ready(out)
    ref = _reference(sentences, embedding_weight)
    assert out.shape == (n_sentences, emb_size)
    assert jnp.allclose(out, ref, atol=1e-4, rtol=1e-4)

    # Second check: multi-tile grid + batch-padding path (B not a multiple of TB).
    sentences2 = jax.random.randint(
        k_idx2, (20, word_pad_len), 0, vocab_size, dtype=jnp.int32
    )
    out2 = jax.block_until_ready(wordbag_forward(sentences2, embedding_weight, tb=8))
    ref2 = _reference(sentences2, embedding_weight)
    assert out2.shape == (20, emb_size)
    assert jnp.allclose(out2, ref2, atol=1e-4, rtol=1e-4)

    print("KERNEL_OK")
</pallas_src>

<mosaic_0001>
module attributes {stable_mosaic.version = 11 : i64} {
  func.func @_wordbag_kernel(%arg0: i32, %arg1: memref<8x8xi32, #tpu.memory_space<vmem>>, %arg2: memref<64x128xf32, #tpu.memory_space<vmem>>, %arg3: memref<8x128xf32, #tpu.memory_space<vmem>>) attributes {dimension_semantics = [#tpu.dimension_semantics<parallel>], iteration_bounds = array<i64: 1>, scalar_prefetch = 0 : i64, scratch_operands = 0 : i64, tpu.core_type = #tpu.core_type<tc>, window_params = [{transform_indices = @transform_0, window_bounds = array<i64: 8, 8>}, {pipeline_mode = #tpu.pipeline_mode<synchronous>, transform_indices = @transform_1, window_bounds = array<i64: 64, 128>}, {transform_indices = @transform_2, window_bounds = array<i64: 8, 128>}]} {
    %c0 = arith.constant 0 : index
    %c0_0 = arith.constant 0 : index
    %0 = vector.load %arg1[%c0, %c0_0] : memref<8x8xi32, #tpu.memory_space<vmem>>, vector<8x8xi32>
    %1 = tpu.iota {dimensions = array<i32: 1>} : vector<8x64xi32>
    %cst = arith.constant 0.000000e+00 : f32
    %2 = vector.broadcast %cst : f32 to vector<8x64xf32>
    %cst_1 = arith.constant 0.000000e+00 : f32
    %3 = vector.broadcast %cst_1 : f32 to vector<8x64xf32>
    %4 = vector.extract_strided_slice %0 {offsets = [0, 0], sizes = [8, 1], strides = [1, 1]} : vector<8x8xi32> to vector<8x1xi32>
    %5 = vector.broadcast %4 : vector<8x1xi32> to vector<8x64xi32>
    %6 = arith.cmpi eq, %1, %5 : vector<8x64xi32>
    %7 = arith.extui %6 : vector<8x64xi1> to vector<8x64xi32>
    %8 = arith.sitofp %7 : vector<8x64xi32> to vector<8x64xf32>
    %9 = arith.addf %2, %8 : vector<8x64xf32>
    %10 = vector.extract_strided_slice %0 {offsets = [0, 1], sizes = [8, 1], strides = [1, 1]} : vector<8x8xi32> to vector<8x1xi32>
    %11 = vector.broadcast %10 : vector<8x1xi32> to vector<8x64xi32>
    %12 = arith.cmpi eq, %1, %11 : vector<8x64xi32>
    %13 = arith.extui %12 : vector<8x64xi1> to vector<8x64xi32>
    %14 = arith.sitofp %13 : vector<8x64xi32> to vector<8x64xf32>
    %15 = arith.addf %3, %14 : vector<8x64xf32>
    %16 = vector.extract_strided_slice %0 {offsets = [0, 2], sizes = [8, 1], strides = [1, 1]} : vector<8x8xi32> to vector<8x1xi32>
    %17 = vector.broadcast %16 : vector<8x1xi32> to vector<8x64xi32>
    %18 = arith.cmpi eq, %1, %17 : vector<8x64xi32>
    %19 = arith.extui %18 : vector<8x64xi1> to vector<8x64xi32>
    %20 = arith.sitofp %19 : vector<8x64xi32> to vector<8x64xf32>
    %21 = arith.addf %9, %20 : vector<8x64xf32>
    %22 = vector.extract_strided_slice %0 {offsets = [0, 3], sizes = [8, 1], strides = [1, 1]} : vector<8x8xi32> to vector<8x1xi32>
    %23 = vector.broadcast %22 : vector<8x1xi32> to vector<8x64xi32>
    %24 = arith.cmpi eq, %1, %23 : vector<8x64xi32>
    %25 = arith.extui %24 : vector<8x64xi1> to vector<8x64xi32>
    %26 = arith.sitofp %25 : vector<8x64xi32> to vector<8x64xf32>
    %27 = arith.addf %15, %26 : vector<8x64xf32>
    %28 = vector.extract_strided_slice %0 {offsets = [0, 4], sizes = [8, 1], strides = [1, 1]} : vector<8x8xi32> to vector<8x1xi32>
    %29 = vector.broadcast %28 : vector<8x1xi32> to vector<8x64xi32>
    %30 = arith.cmpi eq, %1, %29 : vector<8x64xi32>
    %31 = arith.extui %30 : vector<8x64xi1> to vector<8x64xi32>
    %32 = arith.sitofp %31 : vector<8x64xi32> to vector<8x64xf32>
    %33 = arith.addf %21, %32 : vector<8x64xf32>
    %34 = vector.extract_strided_slice %0 {offsets = [0, 5], sizes = [8, 1], strides = [1, 1]} : vector<8x8xi32> to vector<8x1xi32>
    %35 = vector.broadcast %34 : vector<8x1xi32> to vector<8x64xi32>
    %36 = arith.cmpi eq, %1, %35 : vector<8x64xi32>
    %37 = arith.extui %36 : vector<8x64xi1> to vector<8x64xi32>
    %38 = arith.sitofp %37 : vector<8x64xi32> to vector<8x64xf32>
    %39 = arith.addf %27, %38 : vector<8x64xf32>
    %40 = vector.extract_strided_slice %0 {offsets = [0, 6], sizes = [8, 1], strides = [1, 1]} : vector<8x8xi32> to vector<8x1xi32>
    %41 = vector.broadcast %40 : vector<8x1xi32> to vector<8x64xi32>
    %42 = arith.cmpi eq, %1, %41 : vector<8x64xi32>
    %43 = arith.extui %42 : vector<8x64xi1> to vector<8x64xi32>
    %44 = arith.sitofp %43 : vector<8x64xi32> to vector<8x64xf32>
    %45 = arith.addf %33, %44 : vector<8x64xf32>
    %46 = vector.extract_strided_slice %0 {offsets = [0, 7], sizes = [8, 1], strides = [1, 1]} : vector<8x8xi32> to vector<8x1xi32>
    %47 = vector.broadcast %46 : vector<8x1xi32> to vector<8x64xi32>
    %48 = arith.cmpi eq, %1, %47 : vector<8x64xi32>
    %49 = arith.extui %48 : vector<8x64xi1> to vector<8x64xi32>
    %50 = arith.sitofp %49 : vector<8x64xi32> to vector<8x64xf32>
    %51 = arith.addf %39, %50 : vector<8x64xf32>
    %52 = arith.addf %45, %51 : vector<8x64xf32>
    %c0_2 = arith.constant 0 : index
    %c0_3 = arith.constant 0 : index
    %53 = vector.load %arg2[%c0_2, %c0_3] : memref<64x128xf32, #tpu.memory_space<vmem>>, vector<64x128xf32>
    %cst_4 = arith.constant dense<0.000000e+00> : vector<8x128xf32>
    %54 = tpu.matmul %52, %53, %cst_4 {dimension_numbers = #tpu.dot_dimension_numbers<[1], [0], [0], [1], [0, 0, 1, 1], [], []>, precision = #tpu.contract_precision<fp32>} : vector<8x64xf32>, vector<64x128xf32>, vector<8x128xf32> -> vector<8x128xf32>
    %c0_5 = arith.constant 0 : index
    %c0_6 = arith.constant 0 : index
    %55 = vector.load %arg3[%c0_5, %c0_6] : memref<8x128xf32, #tpu.memory_space<vmem>>, vector<8x128xf32>
    tpu.vector_store %arg3[%c0_5, %c0_6], %54 {strides = array<i32>} : memref<8x128xf32, #tpu.memory_space<vmem>>, vector<8x128xf32>,
    return
  }
  func.func @transform_0(%arg0: i32) -> (i32, i32) {
    %c0_i32 = arith.constant 0 : i32
    %c0_i32_0 = arith.constant 0 : i32
    return %arg0, %c0_i32 : i32, i32
  }
  func.func @transform_1(%arg0: i32) -> (i32, i32) {
    %c0_i32 = arith.constant 0 : i32
    %c0_i32_0 = arith.constant 0 : i32
    %c0_i32_1 = arith.constant 0 : i32
    return %c0_i32, %c0_i32_0 : i32, i32
  }
  func.func @transform_2(%arg0: i32) -> (i32, i32) {
    %c0_i32 = arith.constant 0 : i32
    %c0_i32_0 = arith.constant 0 : i32
    return %arg0, %c0_i32 : i32, i32
  }
}

</mosaic_0001>

<llo_original>
// kernel: tpu_custom_call.1
$region0: #{tpu_custom_call.1}
  #allocation0 [shape = 'u32[]', space=smem, size = 0x4, offset = 0x4, fixed_abs, tag = 'smem constant byte address 0x4 - core index']
  #allocation1 [shape = 'u32[144,128]{1,0:T(1,128)}', space=vmem, size = 0x12000, scoped, tag = 'internal scratch']
  %s0 = inlined_call_operand.hbm [shape: s32[8,8], index: 0, kind: input, shape index: {}]
  %s1 = inlined_call_operand.hbm [shape: f32[64,128], index: 1, kind: input, shape index: {}]
  %s2 = inlined_call_operand.hbm [shape: f32[8,128], index: 2, kind: output, shape index: {}]
  %s3 = sld [smem:[#allocation0]]
  $region26: #{tpu_custom_call.1} parent=0
    _
  %s5 = ssub.s32 1, %s3
  %s6 = scalar_select 0, %s5, %s3
  $region1: #{tpu_custom_call.1} parent=0
    #allocation2 [shape = 'u8[4096]{0}', space=vmem, size = 0x1000, scoped, tag = 'input window, operand 0, single buffered']
    #allocation3 [shape = 's32[1]{0}', space=sflag, size = 0x4, scoped, tag = 'scoped memory for tpu_custom_call.1']
    #allocation4 [shape = 's32[1]{0}', space=sflag, size = 0x4, scoped, tag = 'scoped memory for tpu_custom_call.1']
    #allocation5 [shape = 'u8[32768]{0}', space=vmem, size = 0x8000, scoped, tag = 'input window, operand 1, single buffered']
    #allocation6 [shape = 's32[1]{0}', space=sflag, size = 0x4, scoped, tag = 'scoped memory for tpu_custom_call.1']
    #allocation7 [shape = 'u8[4096]{0}', space=vmem, size = 0x1000, scoped, tag = 'output window, operand 0, single buffered']
    %7 = vsyncpa [#allocation3], 0
    %8 = vsyncpa [#allocation6], 0
    %9 = vsyncpa [#allocation4], 0
    // Predicated region
    $region2: #{tpu_custom_call.1} parent=1 // pred_check
      _
    $region3: #{tpu_custom_call.1} parent=1 // pred_check_branch
      %11 = sbr.rel (0) target = $region5
    $region4: #{tpu_custom_call.1} parent=1 // pred_region
      %s13 = ssub.s32 128, 128
      %14 = vsyncadd [#allocation3], %s13
      %s16 = sshll.u32 [#allocation2], 4
      %s17 = int_to_ptr.vmem [resolvable:$true] %s16
      %19 = dma.hbm_to_vmem [thread:$0]  %s0, 128, %s17, [#allocation3]
    $region5: #{tpu_custom_call.1} parent=1 // pred_fallthru
      _
    // Predicated region
    $region6: #{tpu_custom_call.1} parent=1 // pred_check
      _
    $region7: #{tpu_custom_call.1} parent=1 // pred_check_branch
      %21 = sbr.rel (0) target = $region9
    $region8: #{tpu_custom_call.1} parent=1 // pred_region
      %s23 = ssub.s32 1024, 1024
      %24 = vsyncadd [#allocation6], %s23
      %s25 = sshll.u32 [#allocation5], 4
      %s26 = int_to_ptr.vmem [resolvable:$true] %s25
      %31 = dma.hbm_to_vmem [thread:$0]  %s1, 1024, %s26, [#allocation6], 128, 128, 8
    $region9: #{tpu_custom_call.1} parent=1 // pred_fallthru
      _
    // Predicated region
    $region10: #{tpu_custom_call.1} parent=1 // pred_check
      _
    $region11: #{tpu_custom_call.1} parent=1 // pred_check_branch
      %33 = sbr.rel (0) target = $region13
    $region12: #{tpu_custom_call.1} parent=1 // pred_region
      %34 = dma.done [#allocation3], 128
    $region13: #{tpu_custom_call.1} parent=1 // pred_fallthru
      _
    // Predicated region
    $region14: #{tpu_custom_call.1} parent=1 // pred_check
      _
    $region15: #{tpu_custom_call.1} parent=1 // pred_check_branch
      %36 = sbr.rel (0) target = $region17
    $region16: #{tpu_custom_call.1} parent=1 // pred_region
      %37 = dma.done [#allocation6], 1024
    $region17: #{tpu_custom_call.1} parent=1 // pred_fallthru
      _
    %v38 = vld [vmem:[#allocation2] sm:$0xff]
    %v39 = vlaneseq
    %v40 = vand.u32 %v39, 127
    %41 = vset.pattern.permute.xlu0 0
    %42 = vperm.xlu0 %41, %v38
    %v43 = vpop.permute.xlu0 %42
    %vm44 = vcmp.eq.s32.totalorder %v40, %v43
    %v45 = vsel %vm44, 1, 0
    %v46 = vcvt.s32.f32 %v45
    %v47 = vadd.f32 %v46, 0.0
    %48 = vset.pattern.permute.xlu0 1
    %49 = vperm.xlu0 %48, %v38
    %v50 = vpop.permute.xlu0 %49
    %vm51 = vcmp.eq.s32.totalorder %v40, %v50
    %v52 = vsel %vm51, 1, 0
    %v53 = vcvt.s32.f32 %v52
    %v54 = vadd.f32 %v53, 0.0
    %55 = vset.pattern.permute.xlu0 2
    %56 = vperm.xlu0 %55, %v38
    %v57 = vpop.permute.xlu0 %56
    %vm58 = vcmp.eq.s32.totalorder %v40, %v57
    %v59 = vsel %vm58, 1, 0
    %v60 = vcvt.s32.f32 %v59
    %v61 = vadd.f32 %v47, %v60
    %62 = vset.pattern.permute.xlu0 3
    %63 = vperm.xlu0 %62, %v38
    %v64 = vpop.permute.xlu0 %63
    %vm65 = vcmp.eq.s32.totalorder %v40, %v64
    %v66 = vsel %vm65, 1, 0
    %v67 = vcvt.s32.f32 %v66
    %v68 = vadd.f32 %v54, %v67
    %69 = vset.pattern.permute.xlu0 4
    %70 = vperm.xlu0 %69, %v38
    %v71 = vpop.permute.xlu0 %70
    %vm72 = vcmp.eq.s32.totalorder %v40, %v71
    %v73 = vsel %vm72, 1, 0
    %v74 = vcvt.s32.f32 %v73
    %v75 = vadd.f32 %v61, %v74
    %76 = vset.pattern.permute.xlu0 5
    %77 = vperm.xlu0 %76, %v38
    %v78 = vpop.permute.xlu0 %77
    %vm79 = vcmp.eq.s32.totalorder %v40, %v78
    %v80 = vsel %vm79, 1, 0
    %v81 = vcvt.s32.f32 %v80
    %v82 = vadd.f32 %v68, %v81
    %83 = vset.pattern.permute.xlu0 6
    %84 = vperm.xlu0 %83, %v38
    %v85 = vpop.permute.xlu0 %84
    %vm86 = vcmp.eq.s32.totalorder %v40, %v85
    %v87 = vsel %vm86, 1, 0
    %v88 = vcvt.s32.f32 %v87
    %v89 = vadd.f32 %v75, %v88
    %90 = vset.pattern.permute.xlu0 7
    %91 = vperm.xlu0 %90, %v38
    %v92 = vpop.permute.xlu0 %91
    %vm93 = vcmp.eq.s32.totalorder %v40, %v92
    %v94 = vsel %vm93, 1, 0
    %v95 = vcvt.s32.f32 %v94
    %v96 = vadd.f32 %v82, %v95
    %v97 = vadd.f32 %v89, %v96
    %v98 = vld [vmem:[#allocation5] sm:$0xff]
    %v99 = vld [vmem:[#allocation5 + $0x8] sm:$0xff]
    %v100 = vld [vmem:[#allocation5 + $0x10] sm:$0xff]
    %v101 = vld [vmem:[#allocation5 + $0x18] sm:$0xff]
    %v102 = vld [vmem:[#allocation5 + $0x20] sm:$0xff]
    %v103 = vld [vmem:[#allocation5 + $0x28] sm:$0xff]
    %v104 = vld [vmem:[#allocation5 + $0x30] sm:$0xff]
    %v105 = vld [vmem:[#allocation5 + $0x38] sm:$0xff]
    %vm106 = vcmask 523264
    %v108 = vsel %vm106, %v97, 0
    %110 = vmatprep.subr.mxu0 0.0
    %v111 = vand.u32 %v98, 4294901760
    %112 = vmatpush1.msra.mxu0 %v111
    %113 = vmatprep.subr.mxu0 0.0
    %v114 = vand.u32 %v99, 4294901760
    %115 = vmatpush1.msra.mxu0 %v114
    %116 = vmatprep.subr.mxu0 0.0
    %v117 = vand.u32 %v100, 4294901760
    %118 = vmatpush1.msra.mxu0 %v117
    %119 = vmatprep.subr.mxu0 0.0
    %v120 = vand.u32 %v101, 4294901760
    %121 = vmatpush1.msra.mxu0 %v120
    %122 = vmatprep.subr.mxu0 0.0
    %v123 = vand.u32 %v102, 4294901760
    %124 = vmatpush1.msra.mxu0 %v123
    %125 = vmatprep.subr.mxu0 0.0
    %v126 = vand.u32 %v103, 4294901760
    %127 = vmatpush1.msra.mxu0 %v126
    %128 = vmatprep.subr.mxu0 0.0
    %v129 = vand.u32 %v104, 4294901760
    %130 = vmatpush1.msra.mxu0 %v129
    %131 = vmatprep.subr.mxu0 0.0
    %v132 = vand.u32 %v105, 4294901760
    %133 = vmatpush1.msra.mxu0 %v132
    %134 = vmatprep.subr.mxu0 0.0
    %135 = vmatpush1.msra.mxu0 0.0
    %136 = vmatprep.subr.mxu0 0.0
    %137 = vmatpush1.msra.mxu0 0.0
    %138 = vmatprep.subr.mxu0 0.0
    %139 = vmatpush1.msra.mxu0 0.0
    %140 = vmatprep.subr.mxu0 0.0
    %141 = vmatpush1.msra.mxu0 0.0
    %142 = vmatprep.subr.mxu0 0.0
    %143 = vmatpush1.msra.mxu0 0.0
    %144 = vmatprep.subr.mxu0 0.0
    %145 = vmatpush1.msra.mxu0 0.0
    %146 = vmatprep.subr.mxu0 0.0
    %147 = vmatpush1.msra.mxu0 0.0
    %148 = vmatprep.subr.mxu0 0.0
    %149 = vmatpush1.msra.mxu0 0.0
    %150 = vmatprep.subr.mxu0 0.0
    %151 = vmatpush1.msra.mxu0 0.0
    %152 = vmatprep.subr.mxu0 0.0
    %153 = vmatpush1.msra.mxu0 0.0
    %154 = vmatprep.subr.mxu0 0.0
    %155 = vmatpush1.msra.mxu0 0.0
    %156 = vmatprep.subr.mxu0 0.0
    %157 = vmatpush1.msra.mxu0 0.0
    %158 = vmatprep.subr.mxu0 0.0
    %159 = vmatpush1.msra.mxu0 0.0
    %160 = vmatprep.subr.mxu0 0.0
    %161 = vmatpush1.msra.mxu0 0.0
    %162 = vmatprep.subr.mxu0 0.0
    %163 = vmatpush1.msra.mxu0 0.0
    %164 = vmatprep.subr.mxu0 0.0
    %165 = vmatpush1.msra.mxu0 0.0
    %166 = vmatprep.subr.mxu0 0.0
    %167 = vmatpush1.msra.mxu0 0.0
    %168 = vmatprep.subr.mxu0 0.0
    %169 = vmatpush1.msra.mxu0 0.0
    %170 = vmatprep.subr.mxu0 0.0
    %171 = vmatpush1.msra.mxu0 0.0
    %172 = vmatprep.subr.mxu0 0.0
    %173 = vmatpush1.msra.mxu0 0.0
    %174 = vmatprep.subr.mxu0 0.0
    %175 = vmatpush1.msra.mxu0 0.0
    %176 = vmatprep.subr.mxu0 0.0
    %177 = vmatpush1.msra.mxu0 0.0
    %178 = vmatprep.subr.mxu0 0.0
    %179 = vmatpush1.msra.mxu0 0.0
    %180 = vmatprep.subr.mxu0 0.0
    %181 = vmatpush1.msra.mxu0 0.0
    %182 = vmatprep.mubr.f32.mxu0 0.0
    %v183 = vand.u32 %v108, 4294901760
    %v184 = vsub.f32 %v108, %v183
    %v185 = vand.u32 %v184, 4294901760
    %v186 = vsub.f32 %v184, %v185
    %v187 = vand.u32 %v186, 4294901760
    %188 = vmatmul.mubr.f32.gmra.mrb[0].mxu0 %v187
    %v189 = vpop.f32.mrb[0].mxu0
    %v190 = vadd.f32 0.0, %v189
    %v191 = vpop.f32.mrb[0].mxu0
    %192 = vdwg.mxu0
    %193 = vmatprep.subr.mxu0 0.0
    %v194 = vand.u32 %v98, 4294901760
    %v195 = vsub.f32 %v98, %v194
    %v196 = vand.u32 %v195, 4294901760
    %v197 = vsub.f32 %v195, %v196
    %v198 = vand.u32 %v197, 4294901760
    %199 = vmatpush1.msra.mxu0 %v198
    %200 = vmatprep.subr.mxu0 0.0
    %v201 = vand.u32 %v99, 4294901760
    %v202 = vsub.f32 %v99, %v201
    %v203 = vand.u32 %v202, 4294901760
    %v204 = vsub.f32 %v202, %v203
    %v205 = vand.u32 %v204, 4294901760
    %206 = vmatpush1.msra.mxu0 %v205
    %207 = vmatprep.subr.mxu0 0.0
    %v208 = vand.u32 %v100, 4294901760
    %v209 = vsub.f32 %v100, %v208
    %v210 = vand.u32 %v209, 4294901760
    %v211 = vsub.f32 %v209, %v210
    %v212 = vand.u32 %v211, 4294901760
    %213 = vmatpush1.msra.mxu0 %v212
    %214 = vmatprep.subr.mxu0 0.0
    %v215 = vand.u32 %v101, 4294901760
    %v216 = vsub.f32 %v101, %v215
    %v217 = vand.u32 %v216, 4294901760
    %v218 = vsub.f32 %v216, %v217
    %v219 = vand.u32 %v218, 4294901760
    %220 = vmatpush1.msra.mxu0 %v219
    %221 = vmatprep.subr.mxu0 0.0
    %v222 = vand.u32 %v102, 4294901760
    %v223 = vsub.f32 %v102, %v222
    %v224 = vand.u32 %v223, 4294901760
    %v225 = vsub.f32 %v223, %v224
    %v226 = vand.u32 %v225, 4294901760
    %227 = vmatpush1.msra.mxu0 %v226
    %228 = vmatprep.subr.mxu0 0.0
    %v229 = vand.u32 %v103, 4294901760
    %v230 = vsub.f32 %v103, %v229
    %v231 = vand.u32 %v230, 4294901760
    %v232 = vsub.f32 %v230, %v231
    %v233 = vand.u32 %v232, 4294901760
    %234 = vmatpush1.msra.mxu0 %v233
    %235 = vmatprep.subr.mxu0 0.0
    %v236 = vand.u32 %v104, 4294901760
    %v237 = vsub.f32 %v104, %v236
    %v238 = vand.u32 %v237, 4294901760
    %v239 = vsub.f32 %v237, %v238
    %v240 = vand.u32 %v239, 4294901760
    %241 = vmatpush1.msra.mxu0 %v240
    %242 = vmatprep.subr.mxu0 0.0
    %v243 = vand.u32 %v105, 4294901760
    %v244 = vsub.f32 %v105, %v243
    %v245 = vand.u32 %v244, 4294901760
    %v246 = vsub.f32 %v244, %v245
    %v247 = vand.u32 %v246, 4294901760
    %248 = vmatpush1.msra.mxu0 %v247
    %249 = vmatprep.subr.mxu0 0.0
    %250 = vmatpush1.msra.mxu0 0.0
    %251 = vmatprep.subr.mxu0 0.0
    %252 = vmatpush1.msra.mxu0 0.0
    %253 = vmatprep.subr.mxu0 0.0
    %254 = vmatpush1.msra.mxu0 0.0
    %255 = vmatprep.subr.mxu0 0.0
    %256 = vmatpush1.msra.mxu0 0.0
    %257 = vmatprep.subr.mxu0 0.0
    %258 = vmatpush1.msra.mxu0 0.0
    %259 = vmatprep.subr.mxu0 0.0
    %260 = vmatpush1.msra.mxu0 0.0
    %261 = vmatprep.subr.mxu0 0.0
    %262 = vmatpush1.msra.mxu0 0.0
    %263 = vmatprep.subr.mxu0 0.0
    %264 = vmatpush1.msra.mxu0 0.0
    %265 = vmatprep.subr.mxu0 0.0
    %266 = vmatpush1.msra.mxu0 0.0
    %267 = vmatprep.subr.mxu0 0.0
    %268 = vmatpush1.msra.mxu0 0.0
    %269 = vmatprep.subr.mxu0 0.0
    %270 = vmatpush1.msra.mxu0 0.0
    %271 = vmatprep.subr.mxu0 0.0
    %272 = vmatpush1.msra.mxu0 0.0
    %273 = vmatprep.subr.mxu0 0.0
    %274 = vmatpush1.msra.mxu0 0.0
    %275 = vmatprep.subr.mxu0 0.0
    %276 = vmatpush1.msra.mxu0 0.0
    %277 = vmatprep.subr.mxu0 0.0
    %278 = vmatpush1.msra.mxu0 0.0
    %279 = vmatprep.subr.mxu0 0.0
    %280 = vmatpush1.msra.mxu0 0.0
    %281 = vmatprep.subr.mxu0 0.0
    %282 = vmatpush1.msra.mxu0 0.0
    %283 = vmatprep.subr.mxu0 0.0
    %284 = vmatpush1.msra.mxu0 0.0
    %285 = vmatprep.subr.mxu0 0.0
    %286 = vmatpush1.msra.mxu0 0.0
    %287 = vmatprep.subr.mxu0 0.0
    %288 = vmatpush1.msra.mxu0 0.0
    %289 = vmatprep.subr.mxu0 0.0
    %290 = vmatpush1.msra.mxu0 0.0
    %291 = vmatprep.subr.mxu0 0.0
    %292 = vmatpush1.msra.mxu0 0.0
    %293 = vmatprep.subr.mxu0 0.0
    %294 = vmatpush1.msra.mxu0 0.0
    %295 = vmatprep.subr.mxu0 0.0
    %296 = vmatpush1.msra.mxu0 0.0
    %297 = vmatprep.mubr.f32.mxu0 0.0
    %v298 = vand.u32 %v108, 4294901760
    %299 = vmatmul.mubr.f32.gmra.mrb[0].mxu0 %v298
    %v300 = vpop.f32.mrb[0].mxu0
    %v301 = vadd.f32 %v190, %v300
    %v302 = vpop.f32.mrb[0].mxu0
    %303 = vdwg.mxu0
    %304 = vmatprep.subr.mxu0 0.0
    %v305 = vand.u32 %v98, 4294901760
    %v306 = vsub.f32 %v98, %v305
    %307 = vmatpush1.msra.mxu0 %v306
    %308 = vmatprep.subr.mxu0 0.0
    %v309 = vand.u32 %v99, 4294901760
    %v310 = vsub.f32 %v99, %v309
    %311 = vmatpush1.msra.mxu0 %v310
    %312 = vmatprep.subr.mxu0 0.0
    %v313 = vand.u32 %v100, 4294901760
    %v314 = vsub.f32 %v100, %v313
    %315 = vmatpush1.msra.mxu0 %v314
    %316 = vmatprep.subr.mxu0 0.0
    %v317 = vand.u32 %v101, 4294901760
    %v318 = vsub.f32 %v101, %v317
    %319 = vmatpush1.msra.mxu0 %v318
    %320 = vmatprep.subr.mxu0 0.0
    %v321 = vand.u32 %v102, 4294901760
    %v322 = vsub.f32 %v102, %v321
    %323 = vmatpush1.msra.mxu0 %v322
    %324 = vmatprep.subr.mxu0 0.0
    %v325 = vand.u32 %v103, 4294901760
    %v326 = vsub.f32 %v103, %v325
    %327 = vmatpush1.msra.mxu0 %v326
    %328 = vmatprep.subr.mxu0 0.0
    %v329 = vand.u32 %v104, 4294901760
    %v330 = vsub.f32 %v104, %v329
    %331 = vmatpush1.msra.mxu0 %v330
    %332 = vmatprep.subr.mxu0 0.0
    %v333 = vand.u32 %v105, 4294901760
    %v334 = vsub.f32 %v105, %v333
    %335 = vmatpush1.msra.mxu0 %v334
    %336 = vmatprep.subr.mxu0 0.0
    %337 = vmatpush1.msra.mxu0 0.0
    %338 = vmatprep.subr.mxu0 0.0
    %339 = vmatpush1.msra.mxu0 0.0
    %340 = vmatprep.subr.mxu0 0.0
    %341 = vmatpush1.msra.mxu0 0.0
    %342 = vmatprep.subr.mxu0 0.0
    %343 = vmatpush1.msra.mxu0 0.0
    %344 = vmatprep.subr.mxu0 0.0
    %345 = vmatpush1.msra.mxu0 0.0
    %346 = vmatprep.subr.mxu0 0.0
    %347 = vmatpush1.msra.mxu0 0.0
    %348 = vmatprep.subr.mxu0 0.0
    %349 = vmatpush1.msra.mxu0 0.0
    %350 = vmatprep.subr.mxu0 0.0
    %351 = vmatpush1.msra.mxu0 0.0
    %352 = vmatprep.subr.mxu0 0.0
    %353 = vmatpush1.msra.mxu0 0.0
    %354 = vmatprep.subr.mxu0 0.0
    %355 = vmatpush1.msra.mxu0 0.0
    %356 = vmatprep.subr.mxu0 0.0
    %357 = vmatpush1.msra.mxu0 0.0
    %358 = vmatprep.subr.mxu0 0.0
    %359 = vmatpush1.msra.mxu0 0.0
    %360 = vmatprep.subr.mxu0 0.0
    %361 = vmatpush1.msra.mxu0 0.0
    %362 = vmatprep.subr.mxu0 0.0
    %363 = vmatpush1.msra.mxu0 0.0
    %364 = vmatprep.subr.mxu0 0.0
    %365 = vmatpush1.msra.mxu0 0.0
    %366 = vmatprep.subr.mxu0 0.0
    %367 = vmatpush1.msra.mxu0 0.0
    %368 = vmatprep.subr.mxu0 0.0
    %369 = vmatpush1.msra.mxu0 0.0
    %370 = vmatprep.subr.mxu0 0.0
    %371 = vmatpush1.msra.mxu0 0.0
    %372 = vmatprep.subr.mxu0 0.0
    %373 = vmatpush1.msra.mxu0 0.0
    %374 = vmatprep.subr.mxu0 0.0
    %375 = vmatpush1.msra.mxu0 0.0
    %376 = vmatprep.subr.mxu0 0.0
    %377 = vmatpush1.msra.mxu0 0.0
    %378 = vmatprep.subr.mxu0 0.0
    %379 = vmatpush1.msra.mxu0 0.0
    %380 = vmatprep.subr.mxu0 0.0
    %381 = vmatpush1.msra.mxu0 0.0
    %382 = vmatprep.subr.mxu0 0.0
    %383 = vmatpush1.msra.mxu0 0.0
    %384 = vmatprep.mubr.f32.mxu0 0.0
    %v385 = vand.u32 %v108, 4294901760
    %v386 = vsub.f32 %v108, %v385
    %387 = vmatmul.mubr.f32.gmra.mrb[0].mxu0 %v386
    %v388 = vpop.f32.mrb[0].mxu0
    %v389 = vadd.f32 %v301, %v388
    %v390 = vpop.f32.mrb[0].mxu0
    %391 = vdwg.mxu0
    %392 = vmatprep.subr.mxu0 0.0
    %v393 = vand.u32 %v98, 4294901760
    %394 = vmatpush1.msra.mxu0 %v393
    %395 = vmatprep.subr.mxu0 0.0
    %v396 = vand.u32 %v99, 4294901760
    %397 = vmatpush1.msra.mxu0 %v396
    %398 = vmatprep.subr.mxu0 0.0
    %v399 = vand.u32 %v100, 4294901760
    %400 = vmatpush1.msra.mxu0 %v399
    %401 = vmatprep.subr.mxu0 0.0
    %v402 = vand.u32 %v101, 4294901760
    %403 = vmatpush1.msra.mxu0 %v402
    %404 = vmatprep.subr.mxu0 0.0
    %v405 = vand.u32 %v102, 4294901760
    %406 = vmatpush1.msra.mxu0 %v405
    %407 = vmatprep.subr.mxu0 0.0
    %v408 = vand.u32 %v103, 4294901760
    %409 = vmatpush1.msra.mxu0 %v408
    %410 = vmatprep.subr.mxu0 0.0
    %v411 = vand.u32 %v104, 4294901760
    %412 = vmatpush1.msra.mxu0 %v411
    %413 = vmatprep.subr.mxu0 0.0
    %v414 = vand.u32 %v105, 4294901760
    %415 = vmatpush1.msra.mxu0 %v414
    %416 = vmatprep.subr.mxu0 0.0
    %417 = vmatpush1.msra.mxu0 0.0
    %418 = vmatprep.subr.mxu0 0.0
    %419 = vmatpush1.msra.mxu0 0.0
    %420 = vmatprep.subr.mxu0 0.0
    %421 = vmatpush1.msra.mxu0 0.0
    %422 = vmatprep.subr.mxu0 0.0
    %423 = vmatpush1.msra.mxu0 0.0
    %424 = vmatprep.subr.mxu0 0.0
    %425 = vmatpush1.msra.mxu0 0.0
    %426 = vmatprep.subr.mxu0 0.0
    %427 = vmatpush1.msra.mxu0 0.0
    %428 = vmatprep.subr.mxu0 0.0
    %429 = vmatpush1.msra.mxu0 0.0
    %430 = vmatprep.subr.mxu0 0.0
    %431 = vmatpush1.msra.mxu0 0.0
    %432 = vmatprep.subr.mxu0 0.0
    %433 = vmatpush1.msra.mxu0 0.0
    %434 = vmatprep.subr.mxu0 0.0
    %435 = vmatpush1.msra.mxu0 0.0
    %436 = vmatprep.subr.mxu0 0.0
    %437 = vmatpush1.msra.mxu0 0.0
    %438 = vmatprep.subr.mxu0 0.0
    %439 = vmatpush1.msra.mxu0 0.0
    %440 = vmatprep.subr.mxu0 0.0
    %441 = vmatpush1.msra.mxu0 0.0
    %442 = vmatprep.subr.mxu0 0.0
    %443 = vmatpush1.msra.mxu0 0.0
    %444 = vmatprep.subr.mxu0 0.0
    %445 = vmatpush1.msra.mxu0 0.0
    %446 = vmatprep.subr.mxu0 0.0
    %447 = vmatpush1.msra.mxu0 0.0
    %448 = vmatprep.subr.mxu0 0.0
    %449 = vmatpush1.msra.mxu0 0.0
    %450 = vmatprep.subr.mxu0 0.0
    %451 = vmatpush1.msra.mxu0 0.0
    %452 = vmatprep.subr.mxu0 0.0
    %453 = vmatpush1.msra.mxu0 0.0
    %454 = vmatprep.subr.mxu0 0.0
    %455 = vmatpush1.msra.mxu0 0.0
    %456 = vmatprep.subr.mxu0 0.0
    %457 = vmatpush1.msra.mxu0 0.0
    %458 = vmatprep.subr.mxu0 0.0
    %459 = vmatpush1.msra.mxu0 0.0
    %460 = vmatprep.subr.mxu0 0.0
    %461 = vmatpush1.msra.mxu0 0.0
    %462 = vmatprep.subr.mxu0 0.0
    %463 = vmatpush1.msra.mxu0 0.0
    %464 = vmatprep.mubr.f32.mxu0 0.0
    %v465 = vand.u32 %v108, 4294901760
    %v466 = vsub.f32 %v108, %v465
    %v467 = vand.u32 %v466, 4294901760
    %468 = vmatmul.mubr.f32.gmra.mrb[0].mxu0 %v467
    %v469 = vpop.f32.mrb[0].mxu0
    %v470 = vadd.f32 %v389, %v469
    %v471 = vpop.f32.mrb[0].mxu0
    %472 = vdwg.mxu0
    %473 = vmatprep.subr.mxu0 0.0
    %v474 = vand.u32 %v98, 4294901760
    %v475 = vsub.f32 %v98, %v474
    %v476 = vand.u32 %v475, 4294901760
    %477 = vmatpush1.msra.mxu0 %v476
    %478 = vmatprep.subr.mxu0 0.0
    %v479 = vand.u32 %v99, 4294901760
    %v480 = vsub.f32 %v99, %v479
    %v481 = vand.u32 %v480, 4294901760
    %482 = vmatpush1.msra.mxu0 %v481
    %483 = vmatprep.subr.mxu0 0.0
    %v484 = vand.u32 %v100, 4294901760
    %v485 = vsub.f32 %v100, %v484
    %v486 = vand.u32 %v485, 4294901760
    %487 = vmatpush1.msra.mxu0 %v486
    %488 = vmatprep.subr.mxu0 0.0
    %v489 = vand.u32 %v101, 4294901760
    %v490 = vsub.f32 %v101, %v489
    %v491 = vand.u32 %v490, 4294901760
    %492 = vmatpush1.msra.mxu0 %v491
    %493 = vmatprep.subr.mxu0 0.0
    %v494 = vand.u32 %v102, 4294901760
    %v495 = vsub.f32 %v102, %v494
    %v496 = vand.u32 %v495, 4294901760
    %497 = vmatpush1.msra.mxu0 %v496
    %498 = vmatprep.subr.mxu0 0.0
    %v499 = vand.u32 %v103, 4294901760
    %v500 = vsub.f32 %v103, %v499
    %v501 = vand.u32 %v500, 4294901760
    %502 = vmatpush1.msra.mxu0 %v501
    %503 = vmatprep.subr.mxu0 0.0
    %v504 = vand.u32 %v104, 4294901760
    %v505 = vsub.f32 %v104, %v504
    %v506 = vand.u32 %v505, 4294901760
    %507 = vmatpush1.msra.mxu0 %v506
    %508 = vmatprep.subr.mxu0 0.0
    %v509 = vand.u32 %v105, 4294901760
    %v510 = vsub.f32 %v105, %v509
    %v511 = vand.u32 %v510, 4294901760
    %512 = vmatpush1.msra.mxu0 %v511
    %513 = vmatprep.subr.mxu0 0.0
    %514 = vmatpush1.msra.mxu0 0.0
    %515 = vmatprep.subr.mxu0 0.0
    %516 = vmatpush1.msra.mxu0 0.0
    %517 = vmatprep.subr.mxu0 0.0
    %518 = vmatpush1.msra.mxu0 0.0
    %519 = vmatprep.subr.mxu0 0.0
    %520 = vmatpush1.msra.mxu0 0.0
    %521 = vmatprep.subr.mxu0 0.0
    %522 = vmatpush1.msra.mxu0 0.0
    %523 = vmatprep.subr.mxu0 0.0
    %524 = vmatpush1.msra.mxu0 0.0
    %525 = vmatprep.subr.mxu0 0.0
    %526 = vmatpush1.msra.mxu0 0.0
    %527 = vmatprep.subr.mxu0 0.0
    %528 = vmatpush1.msra.mxu0 0.0
    %529 = vmatprep.subr.mxu0 0.0
    %530 = vmatpush1.msra.mxu0 0.0
    %531 = vmatprep.subr.mxu0 0.0
    %532 = vmatpush1.msra.mxu0 0.0
    %533 = vmatprep.subr.mxu0 0.0
    %534 = vmatpush1.msra.mxu0 0.0
    %535 = vmatprep.subr.mxu0 0.0
    %536 = vmatpush1.msra.mxu0 0.0
    %537 = vmatprep.subr.mxu0 0.0
    %538 = vmatpush1.msra.mxu0 0.0
    %539 = vmatprep.subr.mxu0 0.0
    %540 = vmatpush1.msra.mxu0 0.0
    %541 = vmatprep.subr.mxu0 0.0
    %542 = vmatpush1.msra.mxu0 0.0
    %543 = vmatprep.subr.mxu0 0.0
    %544 = vmatpush1.msra.mxu0 0.0
    %545 = vmatprep.subr.mxu0 0.0
    %546 = vmatpush1.msra.mxu0 0.0
    %547 = vmatprep.subr.mxu0 0.0
    %548 = vmatpush1.msra.mxu0 0.0
    %549 = vmatprep.subr.mxu0 0.0
    %550 = vmatpush1.msra.mxu0 0.0
    %551 = vmatprep.subr.mxu0 0.0
    %552 = vmatpush1.msra.mxu0 0.0
    %553 = vmatprep.subr.mxu0 0.0
    %554 = vmatpush1.msra.mxu0 0.0
    %555 = vmatprep.subr.mxu0 0.0
    %556 = vmatpush1.msra.mxu0 0.0
    %557 = vmatprep.subr.mxu0 0.0
    %558 = vmatpush1.msra.mxu0 0.0
    %559 = vmatprep.subr.mxu0 0.0
    %560 = vmatpush1.msra.mxu0 0.0
    %561 = vmatprep.mubr.f32.mxu0 0.0
    %v562 = vand.u32 %v108, 4294901760
    %563 = vmatmul.mubr.f32.gmra.mrb[0].mxu0 %v562
    %v564 = vpop.f32.mrb[0].mxu0
    %v565 = vadd.f32 %v470, %v564
    %v566 = vpop.f32.mrb[0].mxu0
    %567 = vdwg.mxu0
    %568 = vmatprep.subr.mxu0 0.0
    %v569 = vand.u32 %v98, 4294901760
    %570 = vmatpush1.msra.mxu0 %v569
    %571 = vmatprep.subr.mxu0 0.0
    %v572 = vand.u32 %v99, 4294901760
    %573 = vmatpush1.msra.mxu0 %v572
    %574 = vmatprep.subr.mxu0 0.0
    %v575 = vand.u32 %v100, 4294901760
    %576 = vmatpush1.msra.mxu0 %v575
    %577 = vmatprep.subr.mxu0 0.0
    %v578 = vand.u32 %v101, 4294901760
    %579 = vmatpush1.msra.mxu0 %v578
    %580 = vmatprep.subr.mxu0 0.0
    %v581 = vand.u32 %v102, 4294901760
    %582 = vmatpush1.msra.mxu0 %v581
    %583 = vmatprep.subr.mxu0 0.0
    %v584 = vand.u32 %v103, 4294901760
    %585 = vmatpush1.msra.mxu0 %v584
    %586 = vmatprep.subr.mxu0 0.0
    %v587 = vand.u32 %v104, 4294901760
    %588 = vmatpush1.msra.mxu0 %v587
    %589 = vmatprep.subr.mxu0 0.0
    %v590 = vand.u32 %v105, 4294901760
    %591 = vmatpush1.msra.mxu0 %v590
    %592 = vmatprep.subr.mxu0 0.0
    %593 = vmatpush1.msra.mxu0 0.0
    %594 = vmatprep.subr.mxu0 0.0
    %595 = vmatpush1.msra.mxu0 0.0
    %596 = vmatprep.subr.mxu0 0.0
    %597 = vmatpush1.msra.mxu0 0.0
    %598 = vmatprep.subr.mxu0 0.0
    %599 = vmatpush1.msra.mxu0 0.0
    %600 = vmatprep.subr.mxu0 0.0
    %601 = vmatpush1.msra.mxu0 0.0
    %602 = vmatprep.subr.mxu0 0.0
    %603 = vmatpush1.msra.mxu0 0.0
    %604 = vmatprep.subr.mxu0 0.0
    %605 = vmatpush1.msra.mxu0 0.0
    %606 = vmatprep.subr.mxu0 0.0
    %607 = vmatpush1.msra.mxu0 0.0
    %608 = vmatprep.subr.mxu0 0.0
    %609 = vmatpush1.msra.mxu0 0.0
    %610 = vmatprep.subr.mxu0 0.0
    %611 = vmatpush1.msra.mxu0 0.0
    %612 = vmatprep.subr.mxu0 0.0
    %613 = vmatpush1.msra.mxu0 0.0
    %614 = vmatprep.subr.mxu0 0.0
    %615 = vmatpush1.msra.mxu0 0.0
    %616 = vmatprep.subr.mxu0 0.0
    %617 = vmatpush1.msra.mxu0 0.0
    %618 = vmatprep.subr.mxu0 0.0
    %619 = vmatpush1.msra.mxu0 0.0
    %620 = vmatprep.subr.mxu0 0.0
    %621 = vmatpush1.msra.mxu0 0.0
    %622 = vmatprep.subr.mxu0 0.0
    %623 = vmatpush1.msra.mxu0 0.0
    %624 = vmatprep.subr.mxu0 0.0
    %625 = vmatpush1.msra.mxu0 0.0
    %626 = vmatprep.subr.mxu0 0.0
    %627 = vmatpush1.msra.mxu0 0.0
    %628 = vmatprep.subr.mxu0 0.0
    %629 = vmatpush1.msra.mxu0 0.0
    %630 = vmatprep.subr.mxu0 0.0
    %631 = vmatpush1.msra.mxu0 0.0
    %632 = vmatprep.subr.mxu0 0.0
    %633 = vmatpush1.msra.mxu0 0.0
    %634 = vmatprep.subr.mxu0 0.0
    %635 = vmatpush1.msra.mxu0 0.0
    %636 = vmatprep.subr.mxu0 0.0
    %637 = vmatpush1.msra.mxu0 0.0
    %638 = vmatprep.subr.mxu0 0.0
    %639 = vmatpush1.msra.mxu0 0.0
    %640 = vmatprep.mubr.f32.mxu0 0.0
    %v641 = vand.u32 %v108, 4294901760
    %642 = vmatmul.mubr.f32.gmra.mrb[0].mxu0 %v641
    %v643 = vpop.f32.mrb[0].mxu0
    %v644 = vadd.f32 %v565, %v643
    %v645 = vpop.f32.mrb[0].mxu0
    %646 = vdwg.mxu0
    %647 = vst [vmem:[#allocation7] sm:$0xff] %v644
    // Predicated region
    $region18: #{tpu_custom_call.1} parent=1 // pred_check
      _
    $region19: #{tpu_custom_call.1} parent=1 // pred_check_branch
      %649 = sbr.rel (0) target = $region21
    $region20: #{tpu_custom_call.1} parent=1 // pred_region
      %s651 = ssub.s32 128, 128
      %652 = vsyncadd [#allocation4], %s651
      %s654 = sshll.u32 [#allocation7], 4
      %s655 = int_to_ptr.vmem [resolvable:$true] %s654
      %657 = dma.vmem_to_hbm [thread:$0]  %s655, 128, %s2, [#allocation4]
    $region21: #{tpu_custom_call.1} parent=1 // pred_fallthru
      _
    // Predicated region
    $region22: #{tpu_custom_call.1} parent=1 // pred_check
      _
    $region23: #{tpu_custom_call.1} parent=1 // pred_check_branch
      %659 = sbr.rel (0) target = $region25
    $region24: #{tpu_custom_call.1} parent=1 // pred_region
      %660 = dma.done [#allocation4], 128
    $region25: #{tpu_custom_call.1} parent=1 // pred_fallthru
      _
    %661 = vsyncpa [#allocation3], 1
    %662 = vsyncpa [#allocation6], 1
    %663 = vsyncpa [#allocation4], 1

</llo_original>
